<compile_context>
chip_gen: v5e
topology: v5e:2x2
jax: 0.10.0
libtpu: 0.0.40
codegen_flags: <defaults>
</compile_context>

<pallas_src>
import math

import jax
import jax.numpy as jnp
from jax.experimental import pallas as pl
from jax.experimental.pallas import tpu as pltpu

NUM_RELATIONS = 6
HIDDEN_CHANNELS = (256, 256, 256, 256, 256, 256, 256, 256)
HIDDEN_DIMS = (1024, 512)
NODE_EMBEDDING_DIM = 256
NUM_NODE_FEATURES = 13

C = NODE_EMBEDDING_DIM          # every GNN layer is 256 -> 256
TM = 512                        # dst-node tile
TK = 512                        # src-node tile
FEAT_PAD = 128                  # raw node-feature width padded 13 -> 128

# Worst-case double-buffered per-call footprint at 512-tiles:
#   A 2*1.5M (int8) + hs/hd/out 3*2*0.25M + weights ~2M + msg scratch 3M
#   + in-kernel cast temps  ~= 10-12 MiB.  48 MiB leaves ample pipelining
#   headroom and stays under v7x's 64 MiB physical VMEM (128 MiB on v5e/v6e).
VMEM_LIMIT = 48 * 1024 * 1024

_SMEM = pl.BlockSpec(memory_space=pltpu.MemorySpace.SMEM)


# ---------------------------------------------------------------- kernels ---

def _encoder_kernel(x_ref, w_ref, b_ref, o_ref):
    h = jnp.dot(x_ref[...], w_ref[...], preferred_element_type=jnp.float32)
    o_ref[...] = (h + b_ref[...]).astype(o_ref.dtype)


def _rgcn_layer_kernel(alpha_ref, hd_ref, hs_ref, a_ref, wstack_ref, wroot_ref,
                       b_ref, o_ref, msg_ref):
    """Aggregate-then-transform RGCN layer tile.

    Grid = (dst tiles, src tiles).  msg_ref accumulates the per-relation
    neighbor sums [TM, 6*C] in f32 across the src axis; the relation
    transform, root transform, skip add, PReLU and L2 normalize happen once
    at the last src step.
    """
    k = pl.program_id(1)

    @pl.when(k == 0)
    def _():
        msg_ref[...] = jnp.zeros_like(msg_ref)

    hs = hs_ref[...]                                     # [TK, C] bf16
    for r in range(NUM_RELATIONS):                       # static unroll
        ar = a_ref[r].astype(jnp.bfloat16)               # int8 -> bf16 (VPU)
        msg_ref[:, r * C:(r + 1) * C] += jnp.dot(
            ar, hs, preferred_element_type=jnp.float32)

    @pl.when(k == pl.num_programs(1) - 1)
    def _():
        hd = hd_ref[...]                                 # [TM, C] bf16
        # Relation transform applied once per dst tile: [TM,6C] @ [6C,C].
        y = jnp.dot(msg_ref[...].astype(jnp.bfloat16), wstack_ref[...],
                    preferred_element_type=jnp.float32)
        # Root transform + exact f32 skip connection + bias.
        y = y + jnp.dot(hd, wroot_ref[...], preferred_element_type=jnp.float32)
        y = y + hd.astype(jnp.float32) + b_ref[...]
        alpha = alpha_ref[0]
        y = jnp.where(y >= 0.0, y, alpha * y)            # PReLU (single alpha)
        inv = jax.lax.rsqrt(
            jnp.maximum(jnp.sum(y * y, axis=1, keepdims=True), 1e-24))
        o_ref[...] = (y * inv).astype(o_ref.dtype)       # F.normalize(p=2, dim=1)


def _pool_kernel(h_ref, p_ref, gw1_ref, gb1_ref, gw2_ref, gb2_ref, o_ref):
    @pl.when(pl.program_id(0) == 0)
    def _():
        o_ref[...] = jnp.zeros_like(o_ref)
    # graph_pooling MLP (per node tile): Linear -> ReLU -> Linear
    t = jnp.dot(h_ref[...], gw1_ref[...],
                preferred_element_type=jnp.float32) + gb1_ref[...]
    t = jnp.maximum(t, 0.0).astype(jnp.bfloat16)
    t = (jnp.dot(t, gw2_ref[...],
                 preferred_element_type=jnp.float32) + gb2_ref[...]
         ).astype(jnp.bfloat16)
    # global_add_pool: one-hot [G_pad, TM] @ [TM, C] (bf16 MXU), f32 accumulate.
    o_ref[...] += jnp.dot(p_ref[...], t, preferred_element_type=jnp.float32)


# --------------------------------------------------------------- wrappers ---

def _encode(x_pad, w, b):
    n_pad = x_pad.shape[0]
    return pl.pallas_call(
        _encoder_kernel,
        out_shape=jax.ShapeDtypeStruct((n_pad, C), jnp.bfloat16),
        grid_spec=pltpu.PrefetchScalarGridSpec(
            num_scalar_prefetch=0,
            grid=(n_pad // TM,),
            in_specs=[pl.BlockSpec((TM, FEAT_PAD), lambda i: (i, 0)),
                      pl.BlockSpec((FEAT_PAD, C), lambda i: (0, 0)),
                      pl.BlockSpec((1, C), lambda i: (0, 0))],
            out_specs=pl.BlockSpec((TM, C), lambda i: (i, 0))),
        compiler_params=pltpu.CompilerParams(
            dimension_semantics=("parallel",),
            vmem_limit_bytes=VMEM_LIMIT),
    )(x_pad, w, b)


def _rgcn_layer(h, a, alpha, wstack, wroot, b):
    n_pad = h.shape[0]
    return pl.pallas_call(
        _rgcn_layer_kernel,
        out_shape=jax.ShapeDtypeStruct((n_pad, C), jnp.bfloat16),
        grid_spec=pltpu.PrefetchScalarGridSpec(
            num_scalar_prefetch=0,
            grid=(n_pad // TM, n_pad // TK),
            in_specs=[
                _SMEM,                                                          # alpha
                pl.BlockSpec((TM, C), lambda i, k: (i, 0)),                     # h (dst)
                pl.BlockSpec((TK, C), lambda i, k: (k, 0)),                     # h (src)
                pl.BlockSpec((NUM_RELATIONS, TM, TK), lambda i, k: (0, i, k)),  # A (int8)
                pl.BlockSpec((NUM_RELATIONS * C, C), lambda i, k: (0, 0)),      # W_rel stack
                pl.BlockSpec((C, C), lambda i, k: (0, 0)),                      # W_root
                pl.BlockSpec((1, C), lambda i, k: (0, 0)),                      # bias
            ],
            out_specs=pl.BlockSpec((TM, C), lambda i, k: (i, 0)),
            scratch_shapes=[pltpu.VMEM((TM, NUM_RELATIONS * C), jnp.float32)]),
        compiler_params=pltpu.CompilerParams(
            # dst axis is independent -> shardable across v7x's 2 TensorCores.
            dimension_semantics=("parallel", "arbitrary"),
            vmem_limit_bytes=VMEM_LIMIT),
    )(alpha, h, h, a, wstack, wroot, b)


def _graph_pool(h, pool, gw1, gb1, gw2, gb2):
    n_pad = h.shape[0]
    g_pad = pool.shape[0]
    return pl.pallas_call(
        _pool_kernel,
        out_shape=jax.ShapeDtypeStruct((g_pad, C), jnp.float32),
        grid_spec=pltpu.PrefetchScalarGridSpec(
            num_scalar_prefetch=0,
            grid=(n_pad // TM,),
            in_specs=[pl.BlockSpec((TM, C), lambda i: (i, 0)),
                      pl.BlockSpec((g_pad, TM), lambda i: (0, i)),
                      pl.BlockSpec((C, C), lambda i: (0, 0)),
                      pl.BlockSpec((1, C), lambda i: (0, 0)),
                      pl.BlockSpec((C, C), lambda i: (0, 0)),
                      pl.BlockSpec((1, C), lambda i: (0, 0))],
            out_specs=pl.BlockSpec((g_pad, C), lambda i: (0, 0))),
        compiler_params=pltpu.CompilerParams(
            dimension_semantics=("arbitrary",),
            vmem_limit_bytes=VMEM_LIMIT),
    )(h, pool, gw1, gb1, gw2, gb2)


# ----------------------------------------------------------------- params ---

def _init_linear(key, din, dout):
    kw, kb = jax.random.split(key)
    s = 1.0 / math.sqrt(din)
    w = jax.random.uniform(kw, (din, dout), jnp.float32, -s, s)
    b = jax.random.uniform(kb, (1, dout), jnp.float32, -s, s)
    return w, b


def init_params(key):
    keys = jax.random.split(key, 16)
    params = {}
    params['enc_w'], params['enc_b'] = _init_linear(
        keys[0], NUM_NODE_FEATURES, NODE_EMBEDDING_DIM)
    params['prelu_alpha'] = jnp.array([0.25], jnp.float32)   # nn.PReLU default

    layers = []
    dims = (NODE_EMBEDDING_DIM,) + HIDDEN_CHANNELS
    for i in range(len(HIDDEN_CHANNELS)):
        kr, kw, kb = jax.random.split(keys[1 + i], 3)
        din, dout = dims[i], dims[i + 1]
        s = 1.0 / math.sqrt(din)
        w_rel = jax.random.uniform(kw, (NUM_RELATIONS, din, dout), jnp.float32, -s, s)
        w_root = jax.random.uniform(kr, (din, dout), jnp.float32, -s, s)
        b = jax.random.uniform(kb, (1, dout), jnp.float32, -s, s)
        layers.append((w_rel, w_root, b))
    params['rgcn'] = layers

    params['gp1_w'], params['gp1_b'] = _init_linear(
        keys[9], HIDDEN_CHANNELS[-1], HIDDEN_CHANNELS[-1])
    params['gp2_w'], params['gp2_b'] = _init_linear(
        keys[10], HIDDEN_CHANNELS[-1], HIDDEN_CHANNELS[-1])
    params['fc1_w'], params['fc1_b'] = _init_linear(
        keys[11], HIDDEN_CHANNELS[-1], HIDDEN_DIMS[0])
    params['fc2_w'], params['fc2_b'] = _init_linear(
        keys[12], HIDDEN_DIMS[0], HIDDEN_DIMS[1])
    params['out_w'], params['out_b'] = _init_linear(keys[13], HIDDEN_DIMS[1], 1)
    return params


# ---------------------------------------------------------------- forward ---

def rgcn_skip_forward(params, x, edge_index, edge_type, batch, num_graphs):
    N = x.shape[0]
    n_pad = pl.cdiv(N, TM) * TM                 # node count padded to tile size
    g_pad = pl.cdiv(num_graphs, 8) * 8          # graphs padded to sublane width

    # --- wrapper-side layout glue ------------------------------------------
    x_pad = jnp.zeros((n_pad, FEAT_PAD), jnp.bfloat16)
    x_pad = x_pad.at[:N, :NUM_NODE_FEATURES].set(x.astype(jnp.bfloat16))
    enc_w = jnp.zeros((FEAT_PAD, C), jnp.float32)
    enc_w = enc_w.at[:NUM_NODE_FEATURES, :].set(params['enc_w']).astype(jnp.bfloat16)

    # Dense per-relation adjacency A[r, dst, src] built directly in int8
    # (assumes edge multiplicity <= 127; exact when upcast to bf16 in-kernel).
    A = jnp.zeros((NUM_RELATIONS, n_pad, n_pad), jnp.int8)
    A = A.at[edge_type, edge_index[1], edge_index[0]].add(jnp.int8(1))

    # One-hot graph membership for global_add_pool (bf16: exact 0/1 values);
    # padded nodes map to no graph.
    batch_pad = jnp.full((n_pad,), g_pad, jnp.int32).at[:N].set(batch)
    pool = (batch_pad[None, :] == jnp.arange(g_pad)[:, None]).astype(jnp.bfloat16)

    alpha = params['prelu_alpha']

    # --- Pallas pipeline ----------------------------------------------------
    h = _encode(x_pad, enc_w, params['enc_b'])
    for (w_rel, w_root, b) in params['rgcn']:
        # Stack relation weights along rows -> [6C, C] so the transform is one
        # matmul against the concatenated message block [TM, 6C].
        wstack = w_rel.reshape(NUM_RELATIONS * C, C).astype(jnp.bfloat16)
        wroot = w_root.astype(jnp.bfloat16)
        h = _rgcn_layer(h, A, alpha, wstack, wroot, b)

    pooled = _graph_pool(h, pool,
                         params['gp1_w'].astype(jnp.bfloat16), params['gp1_b'],
                         params['gp2_w'].astype(jnp.bfloat16), params['gp2_b'])

    # Tiny post-pool FC stack (rows = num_graphs): plain XLA (MXU would be ~0%
    # utilized in Pallas; avoids a lane-width-1 Pallas output).
    # TODO(synk): dropout implemented as identity (inference / eval semantics).
    g = pooled[:num_graphs]
    g = jnp.maximum(g @ params['fc1_w'] + params['fc1_b'], 0.0)
    g = jnp.maximum(g @ params['fc2_w'] + params['fc2_b'], 0.0)
    out = jnp.maximum(g @ params['out_w'] + params['out_b'], 0.0)
    return out


if __name__ == "__main__":
    key = jax.random.PRNGKey(0)
    kp, kx, ke, kt, kb = jax.random.split(key, 5)

    N, E, G = 32, 64, 2
    params = init_params(kp)
    x = jax.random.normal(kx, (N, NUM_NODE_FEATURES), jnp.float32)
    edge_index = jax.random.randint(ke, (2, E), 0, N, dtype=jnp.int32)
    edge_type = jax.random.randint(kt, (E,), 0, NUM_RELATIONS, dtype=jnp.int32)
    batch = jnp.sort(jax.random.randint(kb, (N,), 0, G, dtype=jnp.int32))

    out = rgcn_skip_forward(params, x, edge_index, edge_type, batch, G)
    out = jax.block_until_ready(out)
    assert out.shape == (G, 1) and out.dtype == jnp.float32
    print("KERNEL_OK")
</pallas_src>

<mosaic_0001>
module attributes {stable_mosaic.version = 11 : i64} {
  func.func @_encoder_kernel(%arg0: i32, %arg1: memref<512x128xbf16, #tpu.memory_space<vmem>>, %arg2: memref<128x256xbf16, #tpu.memory_space<vmem>>, %arg3: memref<1x256xf32, #tpu.memory_space<vmem>>, %arg4: memref<512x256xbf16, #tpu.memory_space<vmem>>) attributes {dimension_semantics = [#tpu.dimension_semantics<parallel>], iteration_bounds = array<i64: 1>, scalar_prefetch = 0 : i64, scratch_operands = 0 : i64, tpu.core_type = #tpu.core_type<tc>, window_params = [{transform_indices = @transform_0, window_bounds = array<i64: 512, 128>}, {pipeline_mode = #tpu.pipeline_mode<synchronous>, transform_indices = @transform_1, window_bounds = array<i64: 128, 256>}, {pipeline_mode = #tpu.pipeline_mode<synchronous>, transform_indices = @transform_2, window_bounds = array<i64: 1, 256>}, {transform_indices = @transform_3, window_bounds = array<i64: 512, 256>}]} {
    %c0 = arith.constant 0 : index
    %c0_0 = arith.constant 0 : index
    %0 = vector.load %arg1[%c0, %c0_0] : memref<512x128xbf16, #tpu.memory_space<vmem>>, vector<512x128xbf16>
    %c0_1 = arith.constant 0 : index
    %c0_2 = arith.constant 0 : index
    %1 = vector.load %arg2[%c0_1, %c0_2] : memref<128x256xbf16, #tpu.memory_space<vmem>>, vector<128x256xbf16>
    %cst = arith.constant dense<0.000000e+00> : vector<512x256xf32>
    %2 = tpu.matmul %0, %1, %cst {dimension_numbers = #tpu.dot_dimension_numbers<[1], [0], [0], [1], [0, 0, 1, 1], [], []>} : vector<512x128xbf16>, vector<128x256xbf16>, vector<512x256xf32> -> vector<512x256xf32>
    %c0_3 = arith.constant 0 : index
    %c0_4 = arith.constant 0 : index
    %3 = vector.load %arg3[%c0_3, %c0_4] : memref<1x256xf32, #tpu.memory_space<vmem>>, vector<1x256xf32>
    %4 = vector.broadcast %3 : vector<1x256xf32> to vector<512x256xf32>
    %5 = arith.addf %2, %4 : vector<512x256xf32>
    %6 = arith.truncf %5 : vector<512x256xf32> to vector<512x256xbf16>
    %c0_5 = arith.constant 0 : index
    %c0_6 = arith.constant 0 : index
    %7 = vector.load %arg4[%c0_5, %c0_6] : memref<512x256xbf16, #tpu.memory_space<vmem>>, vector<512x256xbf16>
    tpu.vector_store %arg4[%c0_5, %c0_6], %6 {strides = array<i32>} : memref<512x256xbf16, #tpu.memory_space<vmem>>, vector<512x256xbf16>,
    return
  }
  func.func @transform_0(%arg0: i32) -> (i32, i32) {
    %c0_i32 = arith.constant 0 : i32
    %c0_i32_0 = arith.constant 0 : i32
    return %arg0, %c0_i32 : i32, i32
  }
  func.func @transform_1(%arg0: i32) -> (i32, i32) {
    %c0_i32 = arith.constant 0 : i32
    %c0_i32_0 = arith.constant 0 : i32
    %c0_i32_1 = arith.constant 0 : i32
    return %c0_i32, %c0_i32_0 : i32, i32
  }
  func.func @transform_2(%arg0: i32) -> (i32, i32) {
    %c0_i32 = arith.constant 0 : i32
    %c0_i32_0 = arith.constant 0 : i32
    %c0_i32_1 = arith.constant 0 : i32
    return %c0_i32, %c0_i32_0 : i32, i32
  }
  func.func @transform_3(%arg0: i32) -> (i32, i32) {
    %c0_i32 = arith.constant 0 : i32
    %c0_i32_0 = arith.constant 0 : i32
    return %arg0, %c0_i32 : i32, i32
  }
}

</mosaic_0001>

<llo_original>
// kernel: tpu_custom_call.1
$region0: #{tpu_custom_call.1}
  #allocation0 [shape = 'u32[]', space=smem, size = 0x4, offset = 0x4, fixed_abs, tag = 'smem constant byte address 0x4 - core index']
  #allocation1 [shape = 'u32[72,128]{1,0:T(1,128)}', space=vmem, size = 0x9000, scoped, tag = 'internal scratch']
  %s0 = inlined_call_operand.hbm [shape: bf16[512,128], index: 0, kind: input, shape index: {}]
  %s1 = inlined_call_operand.hbm [shape: bf16[128,256], index: 1, kind: input, shape index: {}]
  %s2 = inlined_call_operand.hbm [shape: f32[1,256], index: 2, kind: input, shape index: {}]
  %s3 = inlined_call_operand.hbm [shape: bf16[512,256], index: 3, kind: output, shape index: {}]
  %s4 = sld [smem:[#allocation0]]
  $region34: #{tpu_custom_call.1} parent=0
    _
  %s6 = ssub.s32 1, %s4
  %s7 = scalar_select 0, %s6, %s4
  $region1: #{tpu_custom_call.1} parent=0
    #allocation2 [shape = 'u8[131072]{0}', space=vmem, size = 0x20000, scoped, tag = 'input window, operand 0, single buffered']
    #allocation3 [shape = 's32[1]{0}', space=sflag, size = 0x4, scoped, tag = 'scoped memory for tpu_custom_call.1']
    #allocation4 [shape = 's32[1]{0}', space=sflag, size = 0x4, scoped, tag = 'scoped memory for tpu_custom_call.1']
    #allocation5 [shape = 'u8[65536]{0}', space=vmem, size = 0x10000, scoped, tag = 'input window, operand 1, single buffered']
    #allocation6 [shape = 's32[1]{0}', space=sflag, size = 0x4, scoped, tag = 'scoped memory for tpu_custom_call.1']
    #allocation7 [shape = 'u8[1024]{0}', space=vmem, size = 0x400, scoped, tag = 'input window, operand 2, single buffered']
    #allocation8 [shape = 'u8[262144]{0}', space=vmem, size = 0x40000, scoped, tag = 'output window, operand 0, single buffered']
    %8 = vsyncpa [#allocation3], 0
    %9 = vsyncpa [#allocation6], 0
    %10 = vsyncpa [#allocation4], 0
    // Predicated region
    $region2: #{tpu_custom_call.1} parent=1 // pred_check
      _
    $region3: #{tpu_custom_call.1} parent=1 // pred_check_branch
      %12 = sbr.rel (0) target = $region5
    $region4: #{tpu_custom_call.1} parent=1 // pred_region
      %14 = vsyncadd [#allocation3], 0
      %s15 = sshll.u32 %s0, 4
      %s16 = int_to_ptr.hbm [resolvable:$true] %s15
      %s17 = sshll.u32 [#allocation2], 4
      %s18 = int_to_ptr.vmem [resolvable:$true] %s17
      %23 = dma.hbm_to_vmem [thread:$0]  %s16, 4096, %s18, [#allocation3], 64, 64, 4
    $region5: #{tpu_custom_call.1} parent=1 // pred_fallthru
      _
    // Predicated region
    $region6: #{tpu_custom_call.1} parent=1 // pred_check
      _
    $region7: #{tpu_custom_call.1} parent=1 // pred_check_branch
      %25 = sbr.rel (0) target = $region9
    $region8: #{tpu_custom_call.1} parent=1 // pred_region
      %27 = vsyncadd [#allocation6], 0
      %s28 = sshll.u32 %s1, 4
      %s29 = int_to_ptr.hbm [resolvable:$true] %s28
      %s30 = sshll.u32 [#allocation5], 4
      %s31 = int_to_ptr.vmem [resolvable:$true] %s30
      %36 = dma.hbm_to_vmem [thread:$0]  %s29, 2048, %s31, [#allocation6], 128, 128, 8
    $region9: #{tpu_custom_call.1} parent=1 // pred_fallthru
      _
    // Predicated region
    $region10: #{tpu_custom_call.1} parent=1 // pred_check
      _
    $region11: #{tpu_custom_call.1} parent=1 // pred_check_branch
      %38 = sbr.rel (0) target = $region13
    $region12: #{tpu_custom_call.1} parent=1 // pred_region
      %40 = vsyncadd [#allocation6], 0
      %s42 = sshll.u32 %s2, 4
      %s43 = int_to_ptr.hbm [resolvable:$true] %s42
      %s44 = sshll.u32 [#allocation7], 4
      %s45 = int_to_ptr.vmem [resolvable:$true] %s44
      %47 = dma.hbm_to_vmem [thread:$0]  %s43, 32, %s45, [#allocation6]
    $region13: #{tpu_custom_call.1} parent=1 // pred_fallthru
      _
    // Predicated region
    $region14: #{tpu_custom_call.1} parent=1 // pred_check
      _
    $region15: #{tpu_custom_call.1} parent=1 // pred_check_branch
      %49 = sbr.rel (0) target = $region17
    $region16: #{tpu_custom_call.1} parent=1 // pred_region
      %51 = dma.done [#allocation3], 4096
    $region17: #{tpu_custom_call.1} parent=1 // pred_fallthru
      _
    // Predicated region
    $region18: #{tpu_custom_call.1} parent=1 // pred_check
      _
    $region19: #{tpu_custom_call.1} parent=1 // pred_check_branch
      %53 = sbr.rel (0) target = $region21
    $region20: #{tpu_custom_call.1} parent=1 // pred_region
      %55 = dma.done [#allocation6], 2048
    $region21: #{tpu_custom_call.1} parent=1 // pred_fallthru
      _
    // Predicated region
    $region22: #{tpu_custom_call.1} parent=1 // pred_check
      _
    $region23: #{tpu_custom_call.1} parent=1 // pred_check_branch
      %57 = sbr.rel (0) target = $region25
    $region24: #{tpu_custom_call.1} parent=1 // pred_region
      %59 = dma.done [#allocation6], 32
    $region25: #{tpu_custom_call.1} parent=1 // pred_fallthru
      _
    %v60 = vld [vmem:[#allocation2] sm:$0xf]
    %v61 = vld [vmem:[#allocation2 + $0x4] sm:$0xf]
    %v62 = vld [vmem:[#allocation2 + $0x8] sm:$0xf]
    %v63 = vld [vmem:[#allocation2 + $0xc] sm:$0xf]
    %v64 = vld [vmem:[#allocation2 + $0x10] sm:$0xf]
    %v65 = vld [vmem:[#allocation2 + $0x14] sm:$0xf]
    %v66 = vld [vmem:[#allocation2 + $0x18] sm:$0xf]
    %v67 = vld [vmem:[#allocation2 + $0x1c] sm:$0xf]
    %v68 = vld [vmem:[#allocation2 + $0x20] sm:$0xf]
    %v69 = vld [vmem:[#allocation2 + $0x24] sm:$0xf]
    %v70 = vld [vmem:[#allocation2 + $0x28] sm:$0xf]
    %v71 = vld [vmem:[#allocation2 + $0x2c] sm:$0xf]
    %v72 = vld [vmem:[#allocation2 + $0x30] sm:$0xf]
    %v73 = vld [vmem:[#allocation2 + $0x34] sm:$0xf]
    %v74 = vld [vmem:[#allocation2 + $0x38] sm:$0xf]
    %v75 = vld [vmem:[#allocation2 + $0x3c] sm:$0xf]
    %v76 = vld [vmem:[#allocation2 + $0x40] sm:$0xf]
    %v77 = vld [vmem:[#allocation2 + $0x44] sm:$0xf]
    %v78 = vld [vmem:[#allocation2 + $0x48] sm:$0xf]
    %v79 = vld [vmem:[#allocation2 + $0x4c] sm:$0xf]
    %v80 = vld [vmem:[#allocation2 + $0x50] sm:$0xf]
    %v81 = vld [vmem:[#allocation2 + $0x54] sm:$0xf]
    %v82 = vld [vmem:[#allocation2 + $0x58] sm:$0xf]
    %v83 = vld [vmem:[#allocation2 + $0x5c] sm:$0xf]
    %v84 = vld [vmem:[#allocation2 + $0x60] sm:$0xf]
    %v85 = vld [vmem:[#allocation2 + $0x64] sm:$0xf]
    %v86 = vld [vmem:[#allocation2 + $0x68] sm:$0xf]
    %v87 = vld [vmem:[#allocation2 + $0x6c] sm:$0xf]
    %v88 = vld [vmem:[#allocation2 + $0x70] sm:$0xf]
    %v89 = vld [vmem:[#allocation2 + $0x74] sm:$0xf]
    %v90 = vld [vmem:[#allocation2 + $0x78] sm:$0xf]
    %v91 = vld [vmem:[#allocation2 + $0x7c] sm:$0xf]
    %v92 = vld [vmem:[#allocation2 + $0x80] sm:$0xf]
    %v93 = vld [vmem:[#allocation2 + $0x84] sm:$0xf]
    %v94 = vld [vmem:[#allocation2 + $0x88] sm:$0xf]
    %v95 = vld [vmem:[#allocation2 + $0x8c] sm:$0xf]
    %v96 = vld [vmem:[#allocation2 + $0x90] sm:$0xf]
    %v97 = vld [vmem:[#allocation2 + $0x94] sm:$0xf]
    %v98 = vld [vmem:[#allocation2 + $0x98] sm:$0xf]
    %v99 = vld [vmem:[#allocation2 + $0x9c] sm:$0xf]
    %v100 = vld [vmem:[#allocation2 + $0xa0] sm:$0xf]
    %v101 = vld [vmem:[#allocation2 + $0xa4] sm:$0xf]
    %v102 = vld [vmem:[#allocation2 + $0xa8] sm:$0xf]
    %v103 = vld [vmem:[#allocation2 + $0xac] sm:$0xf]
    %v104 = vld [vmem:[#allocation2 + $0xb0] sm:$0xf]
    %v105 = vld [vmem:[#allocation2 + $0xb4] sm:$0xf]
    %v106 = vld [vmem:[#allocation2 + $0xb8] sm:$0xf]
    %v107 = vld [vmem:[#allocation2 + $0xbc] sm:$0xf]
    %v108 = vld [vmem:[#allocation2 + $0xc0] sm:$0xf]
    %v109 = vld [vmem:[#allocation2 + $0xc4] sm:$0xf]
    %v110 = vld [vmem:[#allocation2 + $0xc8] sm:$0xf]
    %v111 = vld [vmem:[#allocation2 + $0xcc] sm:$0xf]
    %v112 = vld [vmem:[#allocation2 + $0xd0] sm:$0xf]
    %v113 = vld [vmem:[#allocation2 + $0xd4] sm:$0xf]
    %v114 = vld [vmem:[#allocation2 + $0xd8] sm:$0xf]
    %v115 = vld [vmem:[#allocation2 + $0xdc] sm:$0xf]
    %v116 = vld [vmem:[#allocation2 + $0xe0] sm:$0xf]
    %v117 = vld [vmem:[#allocation2 + $0xe4] sm:$0xf]
    %v118 = vld [vmem:[#allocation2 + $0xe8] sm:$0xf]
    %v119 = vld [vmem:[#allocation2 + $0xec] sm:$0xf]
    %v120 = vld [vmem:[#allocation2 + $0xf0] sm:$0xf]
    %v121 = vld [vmem:[#allocation2 + $0xf4] sm:$0xf]
    %v122 = vld [vmem:[#allocation2 + $0xf8] sm:$0xf]
    %v123 = vld [vmem:[#allocation2 + $0xfc] sm:$0xf]
    %v124 = vld [vmem:[#allocation5] sm:$0xff]
    %v125 = vld [vmem:[#allocation5 + $0x8] sm:$0xff]
    %v126 = vld [vmem:[#allocation5 + $0x10] sm:$0xff]
    %v127 = vld [vmem:[#allocation5 + $0x18] sm:$0xff]
    %v128 = vld [vmem:[#allocation5 + $0x20] sm:$0xff]
    %v129 = vld [vmem:[#allocation5 + $0x28] sm:$0xff]
    %v130 = vld [vmem:[#allocation5 + $0x30] sm:$0xff]
    %v131 = vld [vmem:[#allocation5 + $0x38] sm:$0xff]
    %v132 = vld [vmem:[#allocation5 + $0x40] sm:$0xff]
    %v133 = vld [vmem:[#allocation5 + $0x48] sm:$0xff]
    %v134 = vld [vmem:[#allocation5 + $0x50] sm:$0xff]
    %v135 = vld [vmem:[#allocation5 + $0x58] sm:$0xff]
    %v136 = vld [vmem:[#allocation5 + $0x60] sm:$0xff]
    %v137 = vld [vmem:[#allocation5 + $0x68] sm:$0xff]
    %v138 = vld [vmem:[#allocation5 + $0x70] sm:$0xff]
    %v139 = vld [vmem:[#allocation5 + $0x78] sm:$0xff]
    %v140 = vld [vmem:[#allocation7] sm:$0x3]
    %v142 = vperm.slane %v140, 0
    %v143 = vperm.slane %v140, 1
    %v210 = vunpack.c.l.b16 %v60
    %v211 = vunpack.c.l.b16 %v61
    %v212 = vunpack.c.l.b16 %v62
    %v213 = vunpack.c.l.b16 %v63
    %v214 = vunpack.c.l.b16 %v64
    %v215 = vunpack.c.l.b16 %v65
    %v216 = vunpack.c.l.b16 %v66
    %v217 = vunpack.c.l.b16 %v67
    %v218 = vunpack.c.l.b16 %v68
    %v219 = vunpack.c.l.b16 %v69
    %v220 = vunpack.c.l.b16 %v70
    %v221 = vunpack.c.l.b16 %v71
    %v222 = vunpack.c.l.b16 %v72
    %v223 = vunpack.c.l.b16 %v73
    %v224 = vunpack.c.l.b16 %v74
    %v225 = vunpack.c.l.b16 %v75
    %v226 = vunpack.c.l.b16 %v76
    %v227 = vunpack.c.l.b16 %v77
    %v228 = vunpack.c.l.b16 %v78
    %v229 = vunpack.c.l.b16 %v79
    %v230 = vunpack.c.l.b16 %v80
    %v231 = vunpack.c.l.b16 %v81
    %v232 = vunpack.c.l.b16 %v82
    %v233 = vunpack.c.l.b16 %v83
    %v234 = vunpack.c.l.b16 %v84
    %v235 = vunpack.c.l.b16 %v85
    %v236 = vunpack.c.l.b16 %v86
    %v237 = vunpack.c.l.b16 %v87
    %v238 = vunpack.c.l.b16 %v88
    %v239 = vunpack.c.l.b16 %v89
    %v240 = vunpack.c.l.b16 %v90
    %v241 = vunpack.c.l.b16 %v91
    %v242 = vunpack.c.l.b16 %v92
    %v243 = vunpack.c.l.b16 %v93
    %v244 = vunpack.c.l.b16 %v94
    %v245 = vunpack.c.l.b16 %v95
    %v246 = vunpack.c.l.b16 %v96
    %v247 = vunpack.c.l.b16 %v97
    %v248 = vunpack.c.l.b16 %v98
    %v249 = vunpack.c.l.b16 %v99
    %v250 = vunpack.c.l.b16 %v100
    %v251 = vunpack.c.l.b16 %v101
    %v252 = vunpack.c.l.b16 %v102
    %v253 = vunpack.c.l.b16 %v103
    %v254 = vunpack.c.l.b16 %v104
    %v255 = vunpack.c.l.b16 %v105
    %v256 = vunpack.c.l.b16 %v106
    %v257 = vunpack.c.l.b16 %v107
    %v258 = vunpack.c.l.b16 %v108
    %v259 = vunpack.c.l.b16 %v109
    %v260 = vunpack.c.l.b16 %v110
    %v261 = vunpack.c.l.b16 %v111
    %v262 = vunpack.c.l.b16 %v112
    %v263 = vunpack.c.l.b16 %v113
    %v264 = vunpack.c.l.b16 %v114
    %v265 = vunpack.c.l.b16 %v115
    %v266 = vunpack.c.l.b16 %v116
    %v267 = vunpack.c.l.b16 %v117
    %v268 = vunpack.c.l.b16 %v118
    %v269 = vunpack.c.l.b16 %v119
    %v270 = vunpack.c.l.b16 %v120
    %v271 = vunpack.c.l.b16 %v121
    %v272 = vunpack.c.l.b16 %v122
    %v273 = vunpack.c.l.b16 %v123
    %v274 = vpack.c.b16 %v211, %v210
    %v275 = vpack.c.b16 %v213, %v212
    %v276 = vpack.c.b16 %v215, %v214
    %v277 = vpack.c.b16 %v217, %v216
    %v278 = vpack.c.b16 %v219, %v218
    %v279 = vpack.c.b16 %v221, %v220
    %v280 = vpack.c.b16 %v223, %v222
    %v281 = vpack.c.b16 %v225, %v224
    %v282 = vpack.c.b16 %v227, %v226
    %v283 = vpack.c.b16 %v229, %v228
    %v284 = vpack.c.b16 %v231, %v230
    %v285 = vpack.c.b16 %v233, %v232
    %v286 = vpack.c.b16 %v235, %v234
    %v287 = vpack.c.b16 %v237, %v236
    %v288 = vpack.c.b16 %v239, %v238
    %v289 = vpack.c.b16 %v241, %v240
    %v290 = vpack.c.b16 %v243, %v242
    %v291 = vpack.c.b16 %v245, %v244
    %v292 = vpack.c.b16 %v247, %v246
    %v293 = vpack.c.b16 %v249, %v248
    %v294 = vpack.c.b16 %v251, %v250
    %v295 = vpack.c.b16 %v253, %v252
    %v296 = vpack.c.b16 %v255, %v254
    %v297 = vpack.c.b16 %v257, %v256
    %v298 = vpack.c.b16 %v259, %v258
    %v299 = vpack.c.b16 %v261, %v260
    %v300 = vpack.c.b16 %v263, %v262
    %v301 = vpack.c.b16 %v265, %v264
    %v302 = vpack.c.b16 %v267, %v266
    %v303 = vpack.c.b16 %v269, %v268
    %v304 = vpack.c.b16 %v271, %v270
    %v305 = vpack.c.b16 %v273, %v272
    %v354 = vunpack.c.l.b16 %v124
    %v355 = vunpack.c.h.b16 %v124
    %v356 = vunpack.c.l.b16 %v125
    %v357 = vunpack.c.h.b16 %v125
    %v358 = vunpack.c.l.b16 %v126
    %v359 = vunpack.c.h.b16 %v126
    %v360 = vunpack.c.l.b16 %v127
    %v361 = vunpack.c.h.b16 %v127
    %v362 = vunpack.c.l.b16 %v128
    %v363 = vunpack.c.h.b16 %v128
    %v364 = vunpack.c.l.b16 %v129
    %v365 = vunpack.c.h.b16 %v129
    %v366 = vunpack.c.l.b16 %v130
    %v367 = vunpack.c.h.b16 %v130
    %v368 = vunpack.c.l.b16 %v131
    %v369 = vunpack.c.h.b16 %v131
    %v370 = vunpack.c.l.b16 %v132
    %v371 = vunpack.c.h.b16 %v132
    %v372 = vunpack.c.l.b16 %v133
    %v373 = vunpack.c.h.b16 %v133
    %v374 = vunpack.c.l.b16 %v134
    %v375 = vunpack.c.h.b16 %v134
    %v376 = vunpack.c.l.b16 %v135
    %v377 = vunpack.c.h.b16 %v135
    %v378 = vunpack.c.l.b16 %v136
    %v379 = vunpack.c.h.b16 %v136
    %v380 = vunpack.c.l.b16 %v137
    %v381 = vunpack.c.h.b16 %v137
    %v382 = vunpack.c.l.b16 %v138
    %v383 = vunpack.c.h.b16 %v138
    %v384 = vunpack.c.l.b16 %v139
    %v385 = vunpack.c.h.b16 %v139
    %v386 = vpack.c.b16 %v356, %v354
    %v387 = vpack.c.b16 %v357, %v355
    %v388 = vpack.c.b16 %v360, %v358
    %v389 = vpack.c.b16 %v361, %v359
    %v390 = vpack.c.b16 %v364, %v362
    %v391 = vpack.c.b16 %v365, %v363
    %v392 = vpack.c.b16 %v368, %v366
    %v393 = vpack.c.b16 %v369, %v367
    %v394 = vpack.c.b16 %v372, %v370
    %v395 = vpack.c.b16 %v373, %v371
    %v396 = vpack.c.b16 %v376, %v374
    %v397 = vpack.c.b16 %v377, %v375
    %v398 = vpack.c.b16 %v380, %v378
    %v399 = vpack.c.b16 %v381, %v379
    %v400 = vpack.c.b16 %v384, %v382
    %v401 = vpack.c.b16 %v385, %v383
    %418 = vmatpush.bf16.msra.mxu0 %v400
    %419 = vmatpush.bf16.msra.mxu0 %v398
    %420 = vmatpush.bf16.msra.mxu0 %v396
    %421 = vmatpush.bf16.msra.mxu0 %v394
    %422 = vmatpush.bf16.msra.mxu0 %v392
    %423 = vmatpush.bf16.msra.mxu0 %v390
    %424 = vmatpush.bf16.msra.mxu0 %v388
    %425 = vmatpush.bf16.msra.mxu0 %v386
    %426 = vmatmul.bf16.gmra.mxu0 %v274
    %v427 = vpop.f32.mrf.mxu0
    %v428 = vadd.f32 %v142, %v427
    %v429 = vpop.f32.mrf.mxu0
    %v430 = vadd.f32 %v142, %v429
    %431 = vmatmul.bf16.gmra.mxu0 %v275
    %v432 = vpop.f32.mrf.mxu0
    %v433 = vadd.f32 %v142, %v432
    %v434 = vpop.f32.mrf.mxu0
    %v435 = vadd.f32 %v142, %v434
    %436 = vmatmul.bf16.gmra.mxu0 %v276
    %v437 = vpop.f32.mrf.mxu0
    %v438 = vadd.f32 %v142, %v437
    %v439 = vpop.f32.mrf.mxu0
    %v440 = vadd.f32 %v142, %v439
    %441 = vmatmul.bf16.gmra.mxu0 %v277
    %v442 = vpop.f32.mrf.mxu0
    %v443 = vadd.f32 %v142, %v442
    %v444 = vpop.f32.mrf.mxu0
    %v445 = vadd.f32 %v142, %v444
    %446 = vmatmul.bf16.gmra.mxu0 %v278
    %v447 = vpop.f32.mrf.mxu0
    %v448 = vadd.f32 %v142, %v447
    %v449 = vpop.f32.mrf.mxu0
    %v450 = vadd.f32 %v142, %v449
    %451 = vmatmul.bf16.gmra.mxu0 %v279
    %v452 = vpop.f32.mrf.mxu0
    %v453 = vadd.f32 %v142, %v452
    %v454 = vpop.f32.mrf.mxu0
    %v455 = vadd.f32 %v142, %v454
    %456 = vmatmul.bf16.gmra.mxu0 %v280
    %v457 = vpop.f32.mrf.mxu0
    %v458 = vadd.f32 %v142, %v457
    %v459 = vpop.f32.mrf.mxu0
    %v460 = vadd.f32 %v142, %v459
    %461 = vmatmul.bf16.gmra.mxu0 %v281
    %v462 = vpop.f32.mrf.mxu0
    %v463 = vadd.f32 %v142, %v462
    %v464 = vpop.f32.mrf.mxu0
    %v465 = vadd.f32 %v142, %v464
    %466 = vmatmul.bf16.gmra.mxu0 %v282
    %v467 = vpop.f32.mrf.mxu0
    %v468 = vadd.f32 %v142, %v467
    %v469 = vpop.f32.mrf.mxu0
    %v470 = vadd.f32 %v142, %v469
    %471 = vmatmul.bf16.gmra.mxu0 %v283
    %v472 = vpop.f32.mrf.mxu0
    %v473 = vadd.f32 %v142, %v472
    %v474 = vpop.f32.mrf.mxu0
    %v475 = vadd.f32 %v142, %v474
    %476 = vmatmul.bf16.gmra.mxu0 %v284
    %v477 = vpop.f32.mrf.mxu0
    %v478 = vadd.f32 %v142, %v477
    %v479 = vpop.f32.mrf.mxu0
    %v480 = vadd.f32 %v142, %v479
    %481 = vmatmul.bf16.gmra.mxu0 %v285
    %v482 = vpop.f32.mrf.mxu0
    %v483 = vadd.f32 %v142, %v482
    %v484 = vpop.f32.mrf.mxu0
    %v485 = vadd.f32 %v142, %v484
    %486 = vmatmul.bf16.gmra.mxu0 %v286
    %v487 = vpop.f32.mrf.mxu0
    %v488 = vadd.f32 %v142, %v487
    %v489 = vpop.f32.mrf.mxu0
    %v490 = vadd.f32 %v142, %v489
    %491 = vmatmul.bf16.gmra.mxu0 %v287
    %v492 = vpop.f32.mrf.mxu0
    %v493 = vadd.f32 %v142, %v492
    %v494 = vpop.f32.mrf.mxu0
    %v495 = vadd.f32 %v142, %v494
    %496 = vmatmul.bf16.gmra.mxu0 %v288
    %v497 = vpop.f32.mrf.mxu0
    %v498 = vadd.f32 %v142, %v497
    %v499 = vpop.f32.mrf.mxu0
    %v500 = vadd.f32 %v142, %v499
    %501 = vmatmul.bf16.gmra.mxu0 %v289
    %v502 = vpop.f32.mrf.mxu0
    %v503 = vadd.f32 %v142, %v502
    %v504 = vpop.f32.mrf.mxu0
    %v505 = vadd.f32 %v142, %v504
    %506 = vmatmul.bf16.gmra.mxu0 %v290
    %v507 = vpop.f32.mrf.mxu0
    %v508 = vadd.f32 %v142, %v507
    %v509 = vpop.f32.mrf.mxu0
    %v510 = vadd.f32 %v142, %v509
    %511 = vmatmul.bf16.gmra.mxu0 %v291
    %v512 = vpop.f32.mrf.mxu0
    %v513 = vadd.f32 %v142, %v512
    %v514 = vpop.f32.mrf.mxu0
    %v515 = vadd.f32 %v142, %v514
    %516 = vmatmul.bf16.gmra.mxu0 %v292
    %v517 = vpop.f32.mrf.mxu0
    %v518 = vadd.f32 %v142, %v517
    %v519 = vpop.f32.mrf.mxu0
    %v520 = vadd.f32 %v142, %v519
    %521 = vmatmul.bf16.gmra.mxu0 %v293
    %v522 = vpop.f32.mrf.mxu0
    %v523 = vadd.f32 %v142, %v522
    %v524 = vpop.f32.mrf.mxu0
    %v525 = vadd.f32 %v142, %v524
    %526 = vmatmul.bf16.gmra.mxu0 %v294
    %v527 = vpop.f32.mrf.mxu0
    %v528 = vadd.f32 %v142, %v527
    %v529 = vpop.f32.mrf.mxu0
    %v530 = vadd.f32 %v142, %v529
    %531 = vmatmul.bf16.gmra.mxu0 %v295
    %v532 = vpop.f32.mrf.mxu0
    %v533 = vadd.f32 %v142, %v532
    %v534 = vpop.f32.mrf.mxu0
    %v535 = vadd.f32 %v142, %v534
    %536 = vmatmul.bf16.gmra.mxu0 %v296
    %v537 = vpop.f32.mrf.mxu0
    %v538 = vadd.f32 %v142, %v537
    %v539 = vpop.f32.mrf.mxu0
    %v540 = vadd.f32 %v142, %v539
    %541 = vmatmul.bf16.gmra.mxu0 %v297
    %v542 = vpop.f32.mrf.mxu0
    %v543 = vadd.f32 %v142, %v542
    %v544 = vpop.f32.mrf.mxu0
    %v545 = vadd.f32 %v142, %v544
    %546 = vmatmul.bf16.gmra.mxu0 %v298
    %v547 = vpop.f32.mrf.mxu0
    %v548 = vadd.f32 %v142, %v547
    %v549 = vpop.f32.mrf.mxu0
    %v550 = vadd.f32 %v142, %v549
    %551 = vmatmul.bf16.gmra.mxu0 %v299
    %v552 = vpop.f32.mrf.mxu0
    %v553 = vadd.f32 %v142, %v552
    %v554 = vpop.f32.mrf.mxu0
    %v555 = vadd.f32 %v142, %v554
    %556 = vmatmul.bf16.gmra.mxu0 %v300
    %v557 = vpop.f32.mrf.mxu0
    %v558 = vadd.f32 %v142, %v557
    %v559 = vpop.f32.mrf.mxu0
    %v560 = vadd.f32 %v142, %v559
    %561 = vmatmul.bf16.gmra.mxu0 %v301
    %v562 = vpop.f32.mrf.mxu0
    %v563 = vadd.f32 %v142, %v562
    %v564 = vpop.f32.mrf.mxu0
    %v565 = vadd.f32 %v142, %v564
    %566 = vmatmul.bf16.gmra.mxu0 %v302
    %v567 = vpop.f32.mrf.mxu0
    %v568 = vadd.f32 %v142, %v567
    %v569 = vpop.f32.mrf.mxu0
    %v570 = vadd.f32 %v142, %v569
    %571 = vmatmul.bf16.gmra.mxu0 %v303
    %v572 = vpop.f32.mrf.mxu0
    %v573 = vadd.f32 %v142, %v572
    %v574 = vpop.f32.mrf.mxu0
    %v575 = vadd.f32 %v142, %v574
    %576 = vmatmul.bf16.gmra.mxu0 %v304
    %v577 = vpop.f32.mrf.mxu0
    %v578 = vadd.f32 %v142, %v577
    %v579 = vpop.f32.mrf.mxu0
    %v580 = vadd.f32 %v142, %v579
    %581 = vmatmul.bf16.gmra.mxu0 %v305
    %v582 = vpop.f32.mrf.mxu0
    %v583 = vadd.f32 %v142, %v582
    %v584 = vpop.f32.mrf.mxu0
    %v585 = vadd.f32 %v142, %v584
    %586 = vdwg.mxu0
    %587 = vmatpush.bf16.msra.mxu0 %v401
    %588 = vmatpush.bf16.msra.mxu0 %v399
    %589 = vmatpush.bf16.msra.mxu0 %v397
    %590 = vmatpush.bf16.msra.mxu0 %v395
    %591 = vmatpush.bf16.msra.mxu0 %v393
    %592 = vmatpush.bf16.msra.mxu0 %v391
    %593 = vmatpush.bf16.msra.mxu0 %v389
    %594 = vmatpush.bf16.msra.mxu0 %v387
    %595 = vmatmul.bf16.gmra.mxu0 %v274
    %v596 = vpop.f32.mrf.mxu0
    %v597 = vadd.f32 %v143, %v596
    %v598 = vpop.f32.mrf.mxu0
    %v599 = vadd.f32 %v143, %v598
    %600 = vmatmul.bf16.gmra.mxu0 %v275
    %v601 = vpop.f32.mrf.mxu0
    %v602 = vadd.f32 %v143, %v601
    %v603 = vpop.f32.mrf.mxu0
    %v604 = vadd.f32 %v143, %v603
    %605 = vmatmul.bf16.gmra.mxu0 %v276
    %v606 = vpop.f32.mrf.mxu0
    %v607 = vadd.f32 %v143, %v606
    %v608 = vpop.f32.mrf.mxu0
    %v609 = vadd.f32 %v143, %v608
    %610 = vmatmul.bf16.gmra.mxu0 %v277
    %v611 = vpop.f32.mrf.mxu0
    %v612 = vadd.f32 %v143, %v611
    %v613 = vpop.f32.mrf.mxu0
    %v614 = vadd.f32 %v143, %v613
    %615 = vmatmul.bf16.gmra.mxu0 %v278
    %v616 = vpop.f32.mrf.mxu0
    %v617 = vadd.f32 %v143, %v616
    %v618 = vpop.f32.mrf.mxu0
    %v619 = vadd.f32 %v143, %v618
    %620 = vmatmul.bf16.gmra.mxu0 %v279
    %v621 = vpop.f32.mrf.mxu0
    %v622 = vadd.f32 %v143, %v621
    %v623 = vpop.f32.mrf.mxu0
    %v624 = vadd.f32 %v143, %v623
    %625 = vmatmul.bf16.gmra.mxu0 %v280
    %v626 = vpop.f32.mrf.mxu0
    %v627 = vadd.f32 %v143, %v626
    %v628 = vpop.f32.mrf.mxu0
    %v629 = vadd.f32 %v143, %v628
    %630 = vmatmul.bf16.gmra.mxu0 %v281
    %v631 = vpop.f32.mrf.mxu0
    %v632 = vadd.f32 %v143, %v631
    %v633 = vpop.f32.mrf.mxu0
    %v634 = vadd.f32 %v143, %v633
    %635 = vmatmul.bf16.gmra.mxu0 %v282
    %v636 = vpop.f32.mrf.mxu0
    %v637 = vadd.f32 %v143, %v636
    %v638 = vpop.f32.mrf.mxu0
    %v639 = vadd.f32 %v143, %v638
    %640 = vmatmul.bf16.gmra.mxu0 %v283
    %v641 = vpop.f32.mrf.mxu0
    %v642 = vadd.f32 %v143, %v641
    %v643 = vpop.f32.mrf.mxu0
    %v644 = vadd.f32 %v143, %v643
    %645 = vmatmul.bf16.gmra.mxu0 %v284
    %v646 = vpop.f32.mrf.mxu0
    %v647 = vadd.f32 %v143, %v646
    %v648 = vpop.f32.mrf.mxu0
    %v649 = vadd.f32 %v143, %v648
    %650 = vmatmul.bf16.gmra.mxu0 %v285
    %v651 = vpop.f32.mrf.mxu0
    %v652 = vadd.f32 %v143, %v651
    %v653 = vpop.f32.mrf.mxu0
    %v654 = vadd.f32 %v143, %v653
    %655 = vmatmul.bf16.gmra.mxu0 %v286
    %v656 = vpop.f32.mrf.mxu0
    %v657 = vadd.f32 %v143, %v656
    %v658 = vpop.f32.mrf.mxu0
    %v659 = vadd.f32 %v143, %v658
    %660 = vmatmul.bf16.gmra.mxu0 %v287
    %v661 = vpop.f32.mrf.mxu0
    %v662 = vadd.f32 %v143, %v661
    %v663 = vpop.f32.mrf.mxu0
    %v664 = vadd.f32 %v143, %v663
    %665 = vmatmul.bf16.gmra.mxu0 %v288
    %v666 = vpop.f32.mrf.mxu0
    %v667 = vadd.f32 %v143, %v666
    %v668 = vpop.f32.mrf.mxu0
    %v669 = vadd.f32 %v143, %v668
    %670 = vmatmul.bf16.gmra.mxu0 %v289
    %v671 = vpop.f32.mrf.mxu0
    %v672 = vadd.f32 %v143, %v671
    %v673 = vpop.f32.mrf.mxu0
    %v674 = vadd.f32 %v143, %v673
    %675 = vmatmul.bf16.gmra.mxu0 %v290
    %v676 = vpop.f32.mrf.mxu0
    %v677 = vadd.f32 %v143, %v676
    %v678 = vpop.f32.mrf.mxu0
    %v679 = vadd.f32 %v143, %v678
    %680 = vmatmul.bf16.gmra.mxu0 %v291
    %v681 = vpop.f32.mrf.mxu0
    %v682 = vadd.f32 %v143, %v681
    %v683 = vpop.f32.mrf.mxu0
    %v684 = vadd.f32 %v143, %v683
    %685 = vmatmul.bf16.gmra.mxu0 %v292
    %v686 = vpop.f32.mrf.mxu0
    %v687 = vadd.f32 %v143, %v686
    %v688 = vpop.f32.mrf.mxu0
    %v689 = vadd.f32 %v143, %v688
    %690 = vmatmul.bf16.gmra.mxu0 %v293
    %v691 = vpop.f32.mrf.mxu0
    %v692 = vadd.f32 %v143, %v691
    %v693 = vpop.f32.mrf.mxu0
    %v694 = vadd.f32 %v143, %v693
    %695 = vmatmul.bf16.gmra.mxu0 %v294
    %v696 = vpop.f32.mrf.mxu0
    %v697 = vadd.f32 %v143, %v696
    %v698 = vpop.f32.mrf.mxu0
    %v699 = vadd.f32 %v143, %v698
    %700 = vmatmul.bf16.gmra.mxu0 %v295
    %v701 = vpop.f32.mrf.mxu0
    %v702 = vadd.f32 %v143, %v701
    %v703 = vpop.f32.mrf.mxu0
    %v704 = vadd.f32 %v143, %v703
    %705 = vmatmul.bf16.gmra.mxu0 %v296
    %v706 = vpop.f32.mrf.mxu0
    %v707 = vadd.f32 %v143, %v706
    %v708 = vpop.f32.mrf.mxu0
    %v709 = vadd.f32 %v143, %v708
    %710 = vmatmul.bf16.gmra.mxu0 %v297
    %v711 = vpop.f32.mrf.mxu0
    %v712 = vadd.f32 %v143, %v711
    %v713 = vpop.f32.mrf.mxu0
    %v714 = vadd.f32 %v143, %v713
    %715 = vmatmul.bf16.gmra.mxu0 %v298
    %v716 = vpop.f32.mrf.mxu0
    %v717 = vadd.f32 %v143, %v716
    %v718 = vpop.f32.mrf.mxu0
    %v719 = vadd.f32 %v143, %v718
    %720 = vmatmul.bf16.gmra.mxu0 %v299
    %v721 = vpop.f32.mrf.mxu0
    %v722 = vadd.f32 %v143, %v721
    %v723 = vpop.f32.mrf.mxu0
    %v724 = vadd.f32 %v143, %v723
    %725 = vmatmul.bf16.gmra.mxu0 %v300
    %v726 = vpop.f32.mrf.mxu0
    %v727 = vadd.f32 %v143, %v726
    %v728 = vpop.f32.mrf.mxu0
    %v729 = vadd.f32 %v143, %v728
    %730 = vmatmul.bf16.gmra.mxu0 %v301
    %v731 = vpop.f32.mrf.mxu0
    %v732 = vadd.f32 %v143, %v731
    %v733 = vpop.f32.mrf.mxu0
    %v734 = vadd.f32 %v143, %v733
    %735 = vmatmul.bf16.gmra.mxu0 %v302
    %v736 = vpop.f32.mrf.mxu0
    %v737 = vadd.f32 %v143, %v736
    %v738 = vpop.f32.mrf.mxu0
    %v739 = vadd.f32 %v143, %v738
    %740 = vmatmul.bf16.gmra.mxu0 %v303
    %v741 = vpop.f32.mrf.mxu0
    %v742 = vadd.f32 %v143, %v741
    %v743 = vpop.f32.mrf.mxu0
    %v744 = vadd.f32 %v143, %v743
    %745 = vmatmul.bf16.gmra.mxu0 %v304
    %v746 = vpop.f32.mrf.mxu0
    %v747 = vadd.f32 %v143, %v746
    %v748 = vpop.f32.mrf.mxu0
    %v749 = vadd.f32 %v143, %v748
    %750 = vmatmul.bf16.gmra.mxu0 %v305
    %v751 = vpop.f32.mrf.mxu0
    %v752 = vadd.f32 %v143, %v751
    %v753 = vpop.f32.mrf.mxu0
    %v754 = vadd.f32 %v143, %v753
    %755 = vdwg.mxu0
    %v756 = vpack.c.bf16 %v597, %v428
    %v757 = vpack.c.bf16 %v599, %v430
    %v758 = vpack.c.bf16 %v602, %v433
    %v759 = vpack.c.bf16 %v604, %v435
    %v760 = vpack.c.bf16 %v607, %v438
    %v761 = vpack.c.bf16 %v609, %v440
    %v762 = vpack.c.bf16 %v612, %v443
    %v763 = vpack.c.bf16 %v614, %v445
    %v764 = vpack.c.bf16 %v617, %v448
    %v765 = vpack.c.bf16 %v619, %v450
    %v766 = vpack.c.bf16 %v622, %v453
    %v767 = vpack.c.bf16 %v624, %v455
    %v768 = vpack.c.bf16 %v627, %v458
    %v769 = vpack.c.bf16 %v629, %v460
    %v770 = vpack.c.bf16 %v632, %v463
    %v771 = vpack.c.bf16 %v634, %v465
    %v772 = vpack.c.bf16 %v637, %v468
    %v773 = vpack.c.bf16 %v639, %v470
    %v774 = vpack.c.bf16 %v642, %v473
    %v775 = vpack.c.bf16 %v644, %v475
    %v776 = vpack.c.bf16 %v647, %v478
    %v777 = vpack.c.bf16 %v649, %v480
    %v778 = vpack.c.bf16 %v652, %v483
    %v779 = vpack.c.bf16 %v654, %v485
    %v780 = vpack.c.bf16 %v657, %v488
    %v781 = vpack.c.bf16 %v659, %v490
    %v782 = vpack.c.bf16 %v662, %v493
    %v783 = vpack.c.bf16 %v664, %v495
    %v784 = vpack.c.bf16 %v667, %v498
    %v785 = vpack.c.bf16 %v669, %v500
    %v786 = vpack.c.bf16 %v672, %v503
    %v787 = vpack.c.bf16 %v674, %v505
    %v788 = vpack.c.bf16 %v677, %v508
    %v789 = vpack.c.bf16 %v679, %v510
    %v790 = vpack.c.bf16 %v682, %v513
    %v791 = vpack.c.bf16 %v684, %v515
    %v792 = vpack.c.bf16 %v687, %v518
    %v793 = vpack.c.bf16 %v689, %v520
    %v794 = vpack.c.bf16 %v692, %v523
    %v795 = vpack.c.bf16 %v694, %v525
    %v796 = vpack.c.bf16 %v697, %v528
    %v797 = vpack.c.bf16 %v699, %v530
    %v798 = vpack.c.bf16 %v702, %v533
    %v799 = vpack.c.bf16 %v704, %v535
    %v800 = vpack.c.bf16 %v707, %v538
    %v801 = vpack.c.bf16 %v709, %v540
    %v802 = vpack.c.bf16 %v712, %v543
    %v803 = vpack.c.bf16 %v714, %v545
    %v804 = vpack.c.bf16 %v717, %v548
    %v805 = vpack.c.bf16 %v719, %v550
    %v806 = vpack.c.bf16 %v722, %v553
    %v807 = vpack.c.bf16 %v724, %v555
    %v808 = vpack.c.bf16 %v727, %v558
    %v809 = vpack.c.bf16 %v729, %v560
    %v810 = vpack.c.bf16 %v732, %v563
    %v811 = vpack.c.bf16 %v734, %v565
    %v812 = vpack.c.bf16 %v737, %v568
    %v813 = vpack.c.bf16 %v739, %v570
    %v814 = vpack.c.bf16 %v742, %v573
    %v815 = vpack.c.bf16 %v744, %v575
    %v816 = vpack.c.bf16 %v747, %v578
    %v817 = vpack.c.bf16 %v749, %v580
    %v818 = vpack.c.bf16 %v752, %v583
    %v819 = vpack.c.bf16 %v754, %v585
    %820 = vst [vmem:[#allocation8] sm:$0xff] %v756
    %821 = vst [vmem:[#allocation8 + $0x8] sm:$0xff] %v757
    %822 = vst [vmem:[#allocation8 + $0x10] sm:$0xff] %v758
    %823 = vst [vmem:[#allocation8 + $0x18] sm:$0xff] %v759
    %824 = vst [vmem:[#allocation8 + $0x20] sm:$0xff] %v760
    %825 = vst [vmem:[#allocation8 + $0x28] sm:$0xff] %v761
    %826 = vst [vmem:[#allocation8 + $0x30] sm:$0xff] %v762
    %827 = vst [vmem:[#allocation8 + $0x38] sm:$0xff] %v763
    %828 = vst [vmem:[#allocation8 + $0x40] sm:$0xff] %v764
    %829 = vst [vmem:[#allocation8 + $0x48] sm:$0xff] %v765
    %830 = vst [vmem:[#allocation8 + $0x50] sm:$0xff] %v766
    %831 = vst [vmem:[#allocation8 + $0x58] sm:$0xff] %v767
    %832 = vst [vmem:[#allocation8 + $0x60] sm:$0xff] %v768
    %833 = vst [vmem:[#allocation8 + $0x68] sm:$0xff] %v769
    %834 = vst [vmem:[#allocation8 + $0x70] sm:$0xff] %v770
    %835 = vst [vmem:[#allocation8 + $0x78] sm:$0xff] %v771
    %836 = vst [vmem:[#allocation8 + $0x80] sm:$0xff] %v772
    %837 = vst [vmem:[#allocation8 + $0x88] sm:$0xff] %v773
    %838 = vst [vmem:[#allocation8 + $0x90] sm:$0xff] %v774
    %839 = vst [vmem:[#allocation8 + $0x98] sm:$0xff] %v775
    %840 = vst [vmem:[#allocation8 + $0xa0] sm:$0xff] %v776
    %841 = vst [vmem:[#allocation8 + $0xa8] sm:$0xff] %v777
    %842 = vst [vmem:[#allocation8 + $0xb0] sm:$0xff] %v778
    %843 = vst [vmem:[#allocation8 + $0xb8] sm:$0xff] %v779
    %844 = vst [vmem:[#allocation8 + $0xc0] sm:$0xff] %v780
    %845 = vst [vmem:[#allocation8 + $0xc8] sm:$0xff] %v781
    %846 = vst [vmem:[#allocation8 + $0xd0] sm:$0xff] %v782
    %847 = vst [vmem:[#allocation8 + $0xd8] sm:$0xff] %v783
    %848 = vst [vmem:[#allocation8 + $0xe0] sm:$0xff] %v784
    %849 = vst [vmem:[#allocation8 + $0xe8] sm:$0xff] %v785
    %850 = vst [vmem:[#allocation8 + $0xf0] sm:$0xff] %v786
    %851 = vst [vmem:[#allocation8 + $0xf8] sm:$0xff] %v787
    %852 = vst [vmem:[#allocation8 + $0x100] sm:$0xff] %v788
    %853 = vst [vmem:[#allocation8 + $0x108] sm:$0xff] %v789
    %854 = vst [vmem:[#allocation8 + $0x110] sm:$0xff] %v790
    %855 = vst [vmem:[#allocation8 + $0x118] sm:$0xff] %v791
    %856 = vst [vmem:[#allocation8 + $0x120] sm:$0xff] %v792
    %857 = vst [vmem:[#allocation8 + $0x128] sm:$0xff] %v793
    %858 = vst [vmem:[#allocation8 + $0x130] sm:$0xff] %v794
    %859 = vst [vmem:[#allocation8 + $0x138] sm:$0xff] %v795
    %860 = vst [vmem:[#allocation8 + $0x140] sm:$0xff] %v796
    %861 = vst [vmem:[#allocation8 + $0x148] sm:$0xff] %v797
    %862 = vst [vmem:[#allocation8 + $0x150] sm:$0xff] %v798
    %863 = vst [vmem:[#allocation8 + $0x158] sm:$0xff] %v799
    %864 = vst [vmem:[#allocation8 + $0x160] sm:$0xff] %v800
    %865 = vst [vmem:[#allocation8 + $0x168] sm:$0xff] %v801
    %866 = vst [vmem:[#allocation8 + $0x170] sm:$0xff] %v802
    %867 = vst [vmem:[#allocation8 + $0x178] sm:$0xff] %v803
    %868 = vst [vmem:[#allocation8 + $0x180] sm:$0xff] %v804
    %869 = vst [vmem:[#allocation8 + $0x188] sm:$0xff] %v805
    %870 = vst [vmem:[#allocation8 + $0x190] sm:$0xff] %v806
    %871 = vst [vmem:[#allocation8 + $0x198] sm:$0xff] %v807
    %872 = vst [vmem:[#allocation8 + $0x1a0] sm:$0xff] %v808
    %873 = vst [vmem:[#allocation8 + $0x1a8] sm:$0xff] %v809
    %874 = vst [vmem:[#allocation8 + $0x1b0] sm:$0xff] %v810
    %875 = vst [vmem:[#allocation8 + $0x1b8] sm:$0xff] %v811
    %876 = vst [vmem:[#allocation8 + $0x1c0] sm:$0xff] %v812
    %877 = vst [vmem:[#allocation8 + $0x1c8] sm:$0xff] %v813
    %878 = vst [vmem:[#allocation8 + $0x1d0] sm:$0xff] %v814
    %879 = vst [vmem:[#allocation8 + $0x1d8] sm:$0xff] %v815
    %880 = vst [vmem:[#allocation8 + $0x1e0] sm:$0xff] %v816
    %881 = vst [vmem:[#allocation8 + $0x1e8] sm:$0xff] %v817
    %882 = vst [vmem:[#allocation8 + $0x1f0] sm:$0xff] %v818
    %883 = vst [vmem:[#allocation8 + $0x1f8] sm:$0xff] %v819
    // Predicated region
    $region26: #{tpu_custom_call.1} parent=1 // pred_check
      _
    $region27: #{tpu_custom_call.1} parent=1 // pred_check_branch
      %885 = sbr.rel (0) target = $region29
    $region28: #{tpu_custom_call.1} parent=1 // pred_region
      %887 = vsyncadd [#allocation4], 0
      %s888 = sshll.u32 [#allocation8], 4
      %s889 = int_to_ptr.vmem [resolvable:$true] %s888
      %s890 = sshll.u32 %s3, 4
      %s891 = int_to_ptr.hbm [resolvable:$true] %s890
      %896 = dma.vmem_to_hbm [thread:$0]  %s889, 8192, %s891, [#allocation4], 128, 128, 8
    $region29: #{tpu_custom_call.1} parent=1 // pred_fallthru
      _
    // Predicated region
    $region30: #{tpu_custom_call.1} parent=1 // pred_check
      _
    $region31: #{tpu_custom_call.1} parent=1 // pred_check_branch
      %898 = sbr.rel (0) target = $region33
    $region32: #{tpu_custom_call.1} parent=1 // pred_region
      %900 = dma.done [#allocation4], 8192
    $region33: #{tpu_custom_call.1} parent=1 // pred_fallthru
      _
    %901 = vsyncpa [#allocation3], 1
    %902 = vsyncpa [#allocation6], 1
    %903 = vsyncpa [#allocation4], 1

</llo_original>
